<compile_context>
chip_gen: v6e
topology: v6e:2x2x1
jax: 0.10.0
libtpu: 0.0.40
codegen_flags: <defaults>
</compile_context>

<pallas_src>
import jax
import jax.numpy as jnp
from jax.experimental import pallas as pl
from jax.experimental.pallas import tpu as pltpu


_IN = 2        # l1 in_features
_HID = 4       # l1 out_features
_LANE = 128    # TPU lane width
_MAX_TILE = 2048


def _round_up(n, m):
    return (n + m - 1) // m * m


def _mlp_kernel(x_ref, w1_ref, b1_ref, w2_ref, b2_ref, o_ref):
    """Lane-dense VPU MLP.

    x_ref  : (2, TB)  VMEM  -- batch on the lane axis
    w1_ref : (2, 4)   SMEM  -- l1.weight^T, read as scalars
    b1_ref : (4,)     SMEM  -- l1.bias
    w2_ref : (4,)     SMEM  -- l3.weight
    b2_ref : (1,)     SMEM  -- l3.bias
    o_ref  : (1, TB)  VMEM  -- lane-dense output
    """
    x0 = x_ref[0:1, :]                                    # (1, TB)
    x1 = x_ref[1:2, :]                                    # (1, TB)
    acc = jnp.full(o_ref.shape, b2_ref[0], dtype=jnp.float32)
    for j in range(_HID):  # fully unrolled: pure VPU FMAs + relu, no MXU
        h = jnp.maximum(w1_ref[0, j] * x0 + w1_ref[1, j] * x1 + b1_ref[j], 0.0)
        acc = acc + w2_ref[j] * h
    o_ref[...] = acc.astype(o_ref.dtype)


def mlp_forward(x, w1, b1, w2, b2):
    """x: (B, 2) f32. Returns (B, 1) f32 (pre-squeeze/view)."""
    B = x.shape[0]
    # Lane-dense batch tiling: pad B up to a multiple of the tile (>=128).
    TB = min(_MAX_TILE, _round_up(max(B, 1), _LANE))
    Bp = _round_up(max(B, 1), TB)
    x_t = jnp.zeros((_IN, Bp), jnp.float32).at[:, :B].set(
        x.astype(jnp.float32).T)

    out = pl.pallas_call(
        _mlp_kernel,
        out_shape=jax.ShapeDtypeStruct((1, Bp), jnp.float32),
        grid=(Bp // TB,),
        in_specs=[
            pl.BlockSpec((_IN, TB), lambda i: (0, i)),   # x tile (pipelined)
            pl.BlockSpec(memory_space=pltpu.SMEM),       # w1 (2,4), loaded once
            pl.BlockSpec(memory_space=pltpu.SMEM),       # b1 (4,)
            pl.BlockSpec(memory_space=pltpu.SMEM),       # w2 (4,)
            pl.BlockSpec(memory_space=pltpu.SMEM),       # b2 (1,)
        ],
        out_specs=pl.BlockSpec((1, TB), lambda i: (0, i)),  # lane-dense output
        compiler_params=pltpu.CompilerParams(
            dimension_semantics=("parallel",)),
    )(x_t, w1, b1, w2, b2)

    return out[:, :B].T                                   # (B, 1)


def model_forward(sample, params):
    """Reproduces Model.forward semantics on a dict `sample`."""
    w1, b1, w2, b2 = params
    x = sample["input"]                                    # (B, 2)
    y = mlp_forward(x, w1, b1, w2, b2)                     # (B, 1)
    if "label" in sample:
        sample["output"] = y.reshape(sample["label"].shape)  # x.view_as(label)
    else:
        sample["output"] = jnp.squeeze(y)                     # x.squeeze()
    return sample


def init_params(key):
    """Deterministic init matching PyTorch Linear shapes (stored transposed)."""
    k1, k2, k3, k4 = jax.random.split(key, 4)
    lim1 = 1.0 / jnp.sqrt(2.0)    # fan_in = 2
    lim2 = 1.0 / jnp.sqrt(4.0)    # fan_in = 4
    w1 = jax.random.uniform(k1, (_IN, _HID), jnp.float32, -lim1, lim1)  # l1.W^T
    b1 = jax.random.uniform(k2, (_HID,), jnp.float32, -lim1, lim1)      # l1.b
    w2 = jax.random.uniform(k3, (_HID,), jnp.float32, -lim2, lim2)      # l3.W
    b2 = jax.random.uniform(k4, (1,), jnp.float32, -lim2, lim2)         # l3.b
    return w1, b1, w2, b2


def _reference(x, params):
    w1, b1, w2, b2 = params
    h = jnp.maximum(x @ w1 + b1[None, :], 0.0)
    return h @ w2.reshape(_HID, 1) + b2[None, :]


if __name__ == "__main__":
    key = jax.random.PRNGKey(0)
    kp, kx = jax.random.split(key)
    params = init_params(kp)

    # Branch 1: no label -> output squeezed to (B,)
    B = 8
    x = jax.random.normal(kx, (B, _IN), jnp.float32)
    sample = model_forward({"input": x}, params)
    out = jax.block_until_ready(sample["output"])
    assert out.shape == (B,), out.shape

    # Branch 2: with label -> output viewed as label's shape
    label = jnp.zeros((B, 1), jnp.float32)
    sample2 = model_forward({"input": x, "label": label}, params)
    out2 = jax.block_until_ready(sample2["output"])
    assert out2.shape == (B, 1), out2.shape

    ref = _reference(x, params)
    assert jnp.allclose(out2, ref, atol=1e-5, rtol=1e-5)
    assert jnp.allclose(out, ref.squeeze(), atol=1e-5, rtol=1e-5)

    # Non-multiple-of-128 batch exercises the pad + slice-back path.
    B3 = 3
    x3 = jax.random.normal(jax.random.PRNGKey(1), (B3, _IN), jnp.float32)
    sample3 = model_forward({"input": x3}, params)
    out3 = jax.block_until_ready(sample3["output"])
    assert out3.shape == (B3,), out3.shape
    assert jnp.allclose(out3, _reference(x3, params).squeeze(),
                        atol=1e-5, rtol=1e-5)

    print("KERNEL_OK")
</pallas_src>

<mosaic_0001>
module attributes {stable_mosaic.version = 11 : i64} {
  func.func @_mlp_kernel(%arg0: i32, %arg1: memref<2x128xf32, #tpu.memory_space<vmem>>, %arg2: memref<2x4xf32, #tpu.memory_space<smem>>, %arg3: memref<4xf32, #tpu.memory_space<smem>>, %arg4: memref<4xf32, #tpu.memory_space<smem>>, %arg5: memref<1xf32, #tpu.memory_space<smem>>, %arg6: memref<1x128xf32, #tpu.memory_space<vmem>>) attributes {dimension_semantics = [#tpu.dimension_semantics<parallel>], iteration_bounds = array<i64: 1>, scalar_prefetch = 0 : i64, scratch_operands = 0 : i64, tpu.core_type = #tpu.core_type<tc>, window_params = [{transform_indices = @transform_0, window_bounds = array<i64: 2, 128>}, {transform_indices = @transform_1, window_bounds = array<i64: 2, 4>}, {transform_indices = @transform_2, window_bounds = array<i64: 4>}, {transform_indices = @transform_3, window_bounds = array<i64: 4>}, {transform_indices = @transform_4, window_bounds = array<i64: 1>}, {transform_indices = @transform_5, window_bounds = array<i64: 1, 128>}]} {
    %c0 = arith.constant 0 : index
    %c0_0 = arith.constant 0 : index
    %0 = vector.load %arg1[%c0, %c0_0] : memref<2x128xf32, #tpu.memory_space<vmem>>, vector<1x128xf32>
    %c1 = arith.constant 1 : index
    %c0_1 = arith.constant 0 : index
    %1 = vector.load %arg1[%c1, %c0_1] : memref<2x128xf32, #tpu.memory_space<vmem>>, vector<1x128xf32>
    %c0_2 = arith.constant 0 : index
    %2 = memref.load %arg5[%c0_2] : memref<1xf32, #tpu.memory_space<smem>>
    %3 = vector.broadcast %2 : f32 to vector<1x128xf32>
    %c0_3 = arith.constant 0 : index
    %c0_4 = arith.constant 0 : index
    %4 = memref.load %arg2[%c0_3, %c0_4] : memref<2x4xf32, #tpu.memory_space<smem>>
    %5 = vector.broadcast %4 : f32 to vector<1x128xf32>
    %6 = arith.mulf %5, %0 : vector<1x128xf32>
    %c1_5 = arith.constant 1 : index
    %c0_6 = arith.constant 0 : index
    %7 = memref.load %arg2[%c1_5, %c0_6] : memref<2x4xf32, #tpu.memory_space<smem>>
    %8 = vector.broadcast %7 : f32 to vector<1x128xf32>
    %9 = arith.mulf %8, %1 : vector<1x128xf32>
    %10 = arith.addf %6, %9 : vector<1x128xf32>
    %c0_7 = arith.constant 0 : index
    %11 = memref.load %arg3[%c0_7] : memref<4xf32, #tpu.memory_space<smem>>
    %12 = vector.broadcast %11 : f32 to vector<1x128xf32>
    %13 = arith.addf %10, %12 : vector<1x128xf32>
    %cst = arith.constant 0.000000e+00 : f32
    %14 = vector.broadcast %cst : f32 to vector<1x128xf32>
    %15 = arith.maximumf %13, %14 : vector<1x128xf32>
    %c0_8 = arith.constant 0 : index
    %16 = memref.load %arg4[%c0_8] : memref<4xf32, #tpu.memory_space<smem>>
    %17 = vector.broadcast %16 : f32 to vector<1x128xf32>
    %18 = arith.mulf %17, %15 : vector<1x128xf32>
    %19 = arith.addf %3, %18 : vector<1x128xf32>
    %c0_9 = arith.constant 0 : index
    %c1_10 = arith.constant 1 : index
    %20 = memref.load %arg2[%c0_9, %c1_10] : memref<2x4xf32, #tpu.memory_space<smem>>
    %21 = vector.broadcast %20 : f32 to vector<1x128xf32>
    %22 = arith.mulf %21, %0 : vector<1x128xf32>
    %c1_11 = arith.constant 1 : index
    %c1_12 = arith.constant 1 : index
    %23 = memref.load %arg2[%c1_11, %c1_12] : memref<2x4xf32, #tpu.memory_space<smem>>
    %24 = vector.broadcast %23 : f32 to vector<1x128xf32>
    %25 = arith.mulf %24, %1 : vector<1x128xf32>
    %26 = arith.addf %22, %25 : vector<1x128xf32>
    %c1_13 = arith.constant 1 : index
    %27 = memref.load %arg3[%c1_13] : memref<4xf32, #tpu.memory_space<smem>>
    %28 = vector.broadcast %27 : f32 to vector<1x128xf32>
    %29 = arith.addf %26, %28 : vector<1x128xf32>
    %cst_14 = arith.constant 0.000000e+00 : f32
    %30 = vector.broadcast %cst_14 : f32 to vector<1x128xf32>
    %31 = arith.maximumf %29, %30 : vector<1x128xf32>
    %c1_15 = arith.constant 1 : index
    %32 = memref.load %arg4[%c1_15] : memref<4xf32, #tpu.memory_space<smem>>
    %33 = vector.broadcast %32 : f32 to vector<1x128xf32>
    %34 = arith.mulf %33, %31 : vector<1x128xf32>
    %35 = arith.addf %19, %34 : vector<1x128xf32>
    %c0_16 = arith.constant 0 : index
    %c2 = arith.constant 2 : index
    %36 = memref.load %arg2[%c0_16, %c2] : memref<2x4xf32, #tpu.memory_space<smem>>
    %37 = vector.broadcast %36 : f32 to vector<1x128xf32>
    %38 = arith.mulf %37, %0 : vector<1x128xf32>
    %c1_17 = arith.constant 1 : index
    %c2_18 = arith.constant 2 : index
    %39 = memref.load %arg2[%c1_17, %c2_18] : memref<2x4xf32, #tpu.memory_space<smem>>
    %40 = vector.broadcast %39 : f32 to vector<1x128xf32>
    %41 = arith.mulf %40, %1 : vector<1x128xf32>
    %42 = arith.addf %38, %41 : vector<1x128xf32>
    %c2_19 = arith.constant 2 : index
    %43 = memref.load %arg3[%c2_19] : memref<4xf32, #tpu.memory_space<smem>>
    %44 = vector.broadcast %43 : f32 to vector<1x128xf32>
    %45 = arith.addf %42, %44 : vector<1x128xf32>
    %cst_20 = arith.constant 0.000000e+00 : f32
    %46 = vector.broadcast %cst_20 : f32 to vector<1x128xf32>
    %47 = arith.maximumf %45, %46 : vector<1x128xf32>
    %c2_21 = arith.constant 2 : index
    %48 = memref.load %arg4[%c2_21] : memref<4xf32, #tpu.memory_space<smem>>
    %49 = vector.broadcast %48 : f32 to vector<1x128xf32>
    %50 = arith.mulf %49, %47 : vector<1x128xf32>
    %51 = arith.addf %35, %50 : vector<1x128xf32>
    %c0_22 = arith.constant 0 : index
    %c3 = arith.constant 3 : index
    %52 = memref.load %arg2[%c0_22, %c3] : memref<2x4xf32, #tpu.memory_space<smem>>
    %53 = vector.broadcast %52 : f32 to vector<1x128xf32>
    %54 = arith.mulf %53, %0 : vector<1x128xf32>
    %c1_23 = arith.constant 1 : index
    %c3_24 = arith.constant 3 : index
    %55 = memref.load %arg2[%c1_23, %c3_24] : memref<2x4xf32, #tpu.memory_space<smem>>
    %56 = vector.broadcast %55 : f32 to vector<1x128xf32>
    %57 = arith.mulf %56, %1 : vector<1x128xf32>
    %58 = arith.addf %54, %57 : vector<1x128xf32>
    %c3_25 = arith.constant 3 : index
    %59 = memref.load %arg3[%c3_25] : memref<4xf32, #tpu.memory_space<smem>>
    %60 = vector.broadcast %59 : f32 to vector<1x128xf32>
    %61 = arith.addf %58, %60 : vector<1x128xf32>
    %cst_26 = arith.constant 0.000000e+00 : f32
    %62 = vector.broadcast %cst_26 : f32 to vector<1x128xf32>
    %63 = arith.maximumf %61, %62 : vector<1x128xf32>
    %c3_27 = arith.constant 3 : index
    %64 = memref.load %arg4[%c3_27] : memref<4xf32, #tpu.memory_space<smem>>
    %65 = vector.broadcast %64 : f32 to vector<1x128xf32>
    %66 = arith.mulf %65, %63 : vector<1x128xf32>
    %67 = arith.addf %51, %66 : vector<1x128xf32>
    %c0_28 = arith.constant 0 : index
    %c0_29 = arith.constant 0 : index
    %68 = vector.load %arg6[%c0_28, %c0_29] : memref<1x128xf32, #tpu.memory_space<vmem>>, vector<1x128xf32>
    tpu.vector_store %arg6[%c0_28, %c0_29], %67 {strides = array<i32>} : memref<1x128xf32, #tpu.memory_space<vmem>>, vector<1x128xf32>,
    return
  }
  func.func @transform_0(%arg0: i32) -> (i32, i32) {
    %c0_i32 = arith.constant 0 : i32
    %c0_i32_0 = arith.constant 0 : i32
    return %c0_i32, %arg0 : i32, i32
  }
  func.func @transform_1(%arg0: i32) -> (i32, i32) {
    %c0_i32 = arith.constant 0 : i32
    %c0_i32_0 = arith.constant 0 : i32
    %c0_i32_1 = arith.constant 0 : i32
    return %c0_i32, %c0_i32_0 : i32, i32
  }
  func.func @transform_2(%arg0: i32) -> i32 {
    %c0_i32 = arith.constant 0 : i32
    %c0_i32_0 = arith.constant 0 : i32
    return %c0_i32 : i32
  }
  func.func @transform_3(%arg0: i32) -> i32 {
    %c0_i32 = arith.constant 0 : i32
    %c0_i32_0 = arith.constant 0 : i32
    return %c0_i32 : i32
  }
  func.func @transform_4(%arg0: i32) -> i32 {
    %c0_i32 = arith.constant 0 : i32
    %c0_i32_0 = arith.constant 0 : i32
    return %c0_i32 : i32
  }
  func.func @transform_5(%arg0: i32) -> (i32, i32) {
    %c0_i32 = arith.constant 0 : i32
    %c0_i32_0 = arith.constant 0 : i32
    return %c0_i32, %arg0 : i32, i32
  }
}

</mosaic_0001>

<llo_original>
// kernel: tpu_custom_call.1
$region0: #{tpu_custom_call.1}
  #allocation0 [shape = 'u32[]', space=smem, size = 0x4, offset = 0x4, fixed_abs, tag = 'smem constant byte address 0x4 - core index']
  #allocation1 [shape = 'u32[144,128]{1,0:T(1,128)}', space=vmem, size = 0x12000, scoped, tag = 'internal scratch']
  #allocation2 [shape = 'f32[1]{0:T(128)S(6)}', space=smem, size = 0x200, scoped, tag = 'scoped memory for tpu_custom_call.1']
  %s0 = inlined_call_operand.vmem [shape: f32[2,128], index: 0, kind: input, shape index: {}]
  %s1 = inlined_call_operand.hbm [shape: f32[2,4], index: 1, kind: input, shape index: {}]
  %s2 = inlined_call_operand.vmem [shape: f32[4], index: 2, kind: input, shape index: {}]
  %s3 = inlined_call_operand.vmem [shape: f32[4], index: 3, kind: input, shape index: {}]
  %s4 = inlined_call_operand.<no memory space> [shape: f32[1], index: 4, kind: input, shape index: {}]
  %s5 = inlined_call_operand.hbm [shape: f32[1,128], index: 5, kind: output, shape index: {}]
  %s6 = sld [smem:[#allocation0]]
  $region42: #{tpu_custom_call.1} parent=0
    _
  %s8 = ssub.s32 1, %s6
  %s9 = scalar_select 0, %s8, %s6
  %10 = sst [smem:[#allocation2]] %s4
  $region1: #{tpu_custom_call.1} parent=0
    #allocation3 [shape = 'u8[1024]{0}', space=smem, size = 0x400, scoped, tag = 'input window, operand 1, single buffered']
    #allocation4 [shape = 's32[1]{0}', space=sflag, size = 0x4, scoped, tag = 'scoped memory for tpu_custom_call.1']
    #allocation5 [shape = 's32[1]{0}', space=sflag, size = 0x4, scoped, tag = 'scoped memory for tpu_custom_call.1']
    #allocation6 [shape = 's32[1]{0}', space=sflag, size = 0x4, scoped, tag = 'scoped memory for tpu_custom_call.1']
    #allocation7 [shape = 'u8[512]{0}', space=smem, size = 0x200, scoped, tag = 'input window, operand 2, single buffered']
    #allocation8 [shape = 'u8[512]{0}', space=smem, size = 0x200, scoped, tag = 'input window, operand 3, single buffered']
    #allocation9 [shape = 's32[1]{0}', space=sflag, size = 0x4, scoped, tag = 'scoped memory for tpu_custom_call.1']
    #allocation10 [shape = 'u8[512]{0}', space=vmem, size = 0x400, scoped, tag = 'output window, operand 0, single buffered']
    %11 = vsyncpa [#allocation5], 0
    %12 = vsyncpa [#allocation6], 0
    %13 = vsyncpa [#allocation9], 0
    %14 = vsyncpa [#allocation4], 0
    // Predicated region
    $region2: #{tpu_custom_call.1} parent=1 // pred_check
      _
    $region3: #{tpu_custom_call.1} parent=1 // pred_check_branch
      %16 = sbr.rel (0) target = $region5
    $region4: #{tpu_custom_call.1} parent=1 // pred_region
      _
    $region5: #{tpu_custom_call.1} parent=1 // pred_fallthru
      _
    // Predicated region
    $region6: #{tpu_custom_call.1} parent=1 // pred_check
      _
    $region7: #{tpu_custom_call.1} parent=1 // pred_check_branch
      %18 = sbr.rel (0) target = $region9
    $region8: #{tpu_custom_call.1} parent=1 // pred_region
      %s20 = ssub.s32 32, 32
      %21 = vsyncadd [#allocation5], %s20
      %24 = dma.hbm_to_smem %s1, 32, [#allocation3], [#allocation5]
    $region9: #{tpu_custom_call.1} parent=1 // pred_fallthru
      _
    // Predicated region
    $region10: #{tpu_custom_call.1} parent=1 // pred_check
      _
    $region11: #{tpu_custom_call.1} parent=1 // pred_check_branch
      %26 = sbr.rel (0) target = $region13
    $region12: #{tpu_custom_call.1} parent=1 // pred_region
      %s28 = ssub.s32 16, 16
      %29 = vsyncadd [#allocation6], %s28
      %s31 = sshll.u32 %s2, 4
      %s32 = int_to_ptr.vmem [resolvable:$true] %s31
      %34 = dma.vmem_to_smem %s32, 16, [#allocation7], [#allocation6]
    $region13: #{tpu_custom_call.1} parent=1 // pred_fallthru
      _
    // Predicated region
    $region14: #{tpu_custom_call.1} parent=1 // pred_check
      _
    $region15: #{tpu_custom_call.1} parent=1 // pred_check_branch
      %36 = sbr.rel (0) target = $region17
    $region16: #{tpu_custom_call.1} parent=1 // pred_region
      %s38 = ssub.s32 16, 16
      %39 = vsyncadd [#allocation9], %s38
      %s41 = sshll.u32 %s3, 4
      %s42 = int_to_ptr.vmem [resolvable:$true] %s41
      %44 = dma.vmem_to_smem %s42, 16, [#allocation8], [#allocation9]
    $region17: #{tpu_custom_call.1} parent=1 // pred_fallthru
      _
    // Predicated region
    $region18: #{tpu_custom_call.1} parent=1 // pred_check
      _
    $region19: #{tpu_custom_call.1} parent=1 // pred_check_branch
      %46 = sbr.rel (0) target = $region21
    $region20: #{tpu_custom_call.1} parent=1 // pred_region
      _
    $region21: #{tpu_custom_call.1} parent=1 // pred_fallthru
      _
    // Predicated region
    $region22: #{tpu_custom_call.1} parent=1 // pred_check
      _
    $region23: #{tpu_custom_call.1} parent=1 // pred_check_branch
      %48 = sbr.rel (0) target = $region25
    $region24: #{tpu_custom_call.1} parent=1 // pred_region
      %49 = dma.done [#allocation5], 32
    $region25: #{tpu_custom_call.1} parent=1 // pred_fallthru
      _
    // Predicated region
    $region26: #{tpu_custom_call.1} parent=1 // pred_check
      _
    $region27: #{tpu_custom_call.1} parent=1 // pred_check_branch
      %51 = sbr.rel (0) target = $region29
    $region28: #{tpu_custom_call.1} parent=1 // pred_region
      %52 = dma.done [#allocation6], 16
    $region29: #{tpu_custom_call.1} parent=1 // pred_fallthru
      _
    // Predicated region
    $region30: #{tpu_custom_call.1} parent=1 // pred_check
      _
    $region31: #{tpu_custom_call.1} parent=1 // pred_check_branch
      %54 = sbr.rel (0) target = $region33
    $region32: #{tpu_custom_call.1} parent=1 // pred_region
      %55 = dma.done [#allocation9], 16
    $region33: #{tpu_custom_call.1} parent=1 // pred_fallthru
      _
    %56 = sfence
    %v57 = vld [vmem:[%s0] sm:$0x1]
    %v58 = vld [vmem:[%s0 + $0x1] sm:$0x1]
    %s59 = sld [smem:[#allocation2]]
    %v60 = vstv %s59
    %s61 = sld [smem:[#allocation3]]
    %v62 = vstv %s61
    %v63 = vmul.f32 %v62, %v57
    %s64 = sld [smem:[#allocation3 + $0x80]]
    %v65 = vstv %s64
    %v66 = vmul.f32 %v65, %v58
    %v67 = vadd.f32 %v63, %v66
    %s68 = sld [smem:[#allocation7]]
    %v69 = vstv %s68
    %v70 = vadd.f32 %v67, %v69
    %v71 = vmax.f32 %v70, 0.0
    %s72 = sld [smem:[#allocation8]]
    %v73 = vstv %s72
    %v74 = vmul.f32 %v73, %v71
    %v75 = vadd.f32 %v60, %v74
    %s76 = sld [smem:[#allocation3 + $0x1]]
    %v77 = vstv %s76
    %v78 = vmul.f32 %v77, %v57
    %s79 = sld [smem:[#allocation3 + $0x81]]
    %v80 = vstv %s79
    %v81 = vmul.f32 %v80, %v58
    %v82 = vadd.f32 %v78, %v81
    %s83 = sld [smem:[#allocation7 + $0x1]]
    %v84 = vstv %s83
    %v85 = vadd.f32 %v82, %v84
    %v86 = vmax.f32 %v85, 0.0
    %s87 = sld [smem:[#allocation8 + $0x1]]
    %v88 = vstv %s87
    %v89 = vmul.f32 %v88, %v86
    %v90 = vadd.f32 %v75, %v89
    %s91 = sld [smem:[#allocation3 + $0x2]]
    %v92 = vstv %s91
    %v93 = vmul.f32 %v92, %v57
    %s94 = sld [smem:[#allocation3 + $0x82]]
    %v95 = vstv %s94
    %v96 = vmul.f32 %v95, %v58
    %v97 = vadd.f32 %v93, %v96
    %s98 = sld [smem:[#allocation7 + $0x2]]
    %v99 = vstv %s98
    %v100 = vadd.f32 %v97, %v99
    %v101 = vmax.f32 %v100, 0.0
    %s102 = sld [smem:[#allocation8 + $0x2]]
    %v103 = vstv %s102
    %v104 = vmul.f32 %v103, %v101
    %v105 = vadd.f32 %v90, %v104
    %s106 = sld [smem:[#allocation3 + $0x3]]
    %v107 = vstv %s106
    %v108 = vmul.f32 %v107, %v57
    %s109 = sld [smem:[#allocation3 + $0x83]]
    %v110 = vstv %s109
    %v111 = vmul.f32 %v110, %v58
    %v112 = vadd.f32 %v108, %v111
    %s113 = sld [smem:[#allocation7 + $0x3]]
    %v114 = vstv %s113
    %v115 = vadd.f32 %v112, %v114
    %v116 = vmax.f32 %v115, 0.0
    %s117 = sld [smem:[#allocation8 + $0x3]]
    %v118 = vstv %s117
    %v119 = vmul.f32 %v118, %v116
    %v120 = vadd.f32 %v105, %v119
    %121 = vst [vmem:[#allocation10] sm:$0x1] %v120
    // Predicated region
    $region34: #{tpu_custom_call.1} parent=1 // pred_check
      _
    $region35: #{tpu_custom_call.1} parent=1 // pred_check_branch
      %123 = sbr.rel (0) target = $region37
    $region36: #{tpu_custom_call.1} parent=1 // pred_region
      %s125 = ssub.s32 16, 16
      %126 = vsyncadd [#allocation4], %s125
      %s128 = sshll.u32 [#allocation10], 4
      %s129 = int_to_ptr.vmem [resolvable:$true] %s128
      %131 = dma.vmem_to_hbm [thread:$0]  %s129, 16, %s5, [#allocation4]
    $region37: #{tpu_custom_call.1} parent=1 // pred_fallthru
      _
    // Predicated region
    $region38: #{tpu_custom_call.1} parent=1 // pred_check
      _
    $region39: #{tpu_custom_call.1} parent=1 // pred_check_branch
      %133 = sbr.rel (0) target = $region41
    $region40: #{tpu_custom_call.1} parent=1 // pred_region
      %134 = dma.done [#allocation4], 16
    $region41: #{tpu_custom_call.1} parent=1 // pred_fallthru
      _
    %135 = vsyncpa [#allocation4], 1
    %136 = vsyncpa [#allocation5], 1
    %137 = vsyncpa [#allocation6], 1
    %138 = vsyncpa [#allocation9], 1

</llo_original>
